<compile_context>
chip_gen: v6e
topology: v6e:2x2x1
jax: 0.10.0
libtpu: 0.0.40
codegen_flags: <defaults>
</compile_context>

<pallas_src>
import functools

import jax
import jax.numpy as jnp
from jax.experimental import pallas as pl
from jax.experimental.pallas import tpu as pltpu


def _round_up(n, m):
    return ((n + m - 1) // m) * m


def _choose_fold(x_dim, y_dim, h2):
    """Largest row-fold factor (<=8) that keeps folded dims lane/MXU friendly."""
    for f in (8, 4, 2):
        if f * x_dim <= 128 and f * y_dim <= 128 and f * 2 * h2 <= 512:
            return f
    return 1


def _club_kernel(x_ref, y_ref, yp_ref, w1_ref, b1_ref, w2_ref, b2_ref, out_ref,
                 *, ld, tbf, mask_tail, n_valid_frows):
    # Fused layer 1 for `fold` rows per folded row: one MXU pass.
    h = jnp.dot(x_ref[...], w1_ref[...], preferred_element_type=jnp.float32)
    h = jnp.maximum(h + b1_ref[...], 0.0)

    # Fused block-diagonal layer 2: output lanes = [mu (ld) | logvar_pre (ld)].
    z = jnp.dot(h, w2_ref[...], preferred_element_type=jnp.float32) + b2_ref[...]
    mu = z[:, :ld]                               # vreg-aligned lane split
    inv_var = jnp.exp(-jnp.tanh(z[:, ld:]))      # 1 / exp(logvar), EUP ops

    y = y_ref[...].astype(jnp.float32)
    yp = yp_ref[...].astype(jnp.float32)

    # sum(pos - neg) = sum((2*mu - y - yp) * (y - yp) / exp(logvar))
    diff = (2.0 * mu - y - yp) * (y - yp) * inv_var          # (tbf, ld)

    if mask_tail:
        # Only the last (partial) tile actually has out-of-bounds folded rows;
        # for full tiles the compare is all-true (cheap VPU work).
        frow = pl.program_id(0) * tbf + jax.lax.broadcasted_iota(
            jnp.int32, diff.shape, 0)
        diff = jnp.where(frow < n_valid_frows, diff, 0.0)

    # Per-(sublane, lane) partial sums: reduce across vregs only (VPU adds,
    # no cross-lane XLU reduce), lane-dense (8, ld) store.
    partial = jnp.sum(diff.reshape(tbf // 8, 8, ld), axis=0)
    out_ref[...] = partial[None]


@functools.partial(jax.jit, static_argnames=("tile_b",))
def club_sample_forward(x, y, perm, params, tile_b=4096):
    """CLUBSample upper bound (scalar f32). perm = torch.randperm equivalent."""
    B, x_dim = x.shape
    y_dim = y.shape[-1]
    (w1m, b1m, w2m, b2m, w1l, b1l, w2l, b2l) = params
    h2 = w1m.shape[1]
    f32 = jnp.float32

    fold = _choose_fold(x_dim, y_dim, h2)
    ld = fold * y_dim                                    # mu / logvar lane width

    # ---- Folded, fused weights (tiny; traced once per compile). ----
    eye = jnp.eye(fold, dtype=f32)
    w1f = jnp.concatenate([w1m, w1l], axis=1).astype(f32)        # (x_dim, 2*h2)
    w1_full = jnp.kron(eye, w1f)                                 # (fold*x_dim, fold*2*h2)
    b1_full = jnp.tile(jnp.concatenate([b1m, b1l], axis=1).astype(f32), (1, fold))
    zblk = jnp.zeros((h2, y_dim), f32)
    w2_full = jnp.concatenate([                                   # (fold*2*h2, 2*ld)
        jnp.kron(eye, jnp.concatenate([w2m.astype(f32), zblk], axis=0)),   # -> mu lanes
        jnp.kron(eye, jnp.concatenate([zblk, w2l.astype(f32)], axis=0)),   # -> logvar lanes
    ], axis=1)
    b2_full = jnp.concatenate([jnp.tile(b2m.astype(f32), (1, fold)),
                               jnp.tile(b2l.astype(f32), (1, fold))], axis=1)

    # Permute BEFORE padding/reshaping (matches y_samples[random_index]).
    y_perm = y[perm]

    # ---- Row folding: pad to a multiple of 8*fold, then a free reshape. ----
    row_align = 8 * fold
    b_pad = _round_up(B, row_align)
    if b_pad != B:
        pad = ((0, b_pad - B), (0, 0))
        x = jnp.pad(x, pad)            # zero y/yp rows contribute exactly 0
        y = jnp.pad(y, pad)
        y_perm = jnp.pad(y_perm, pad)
    xf = x.reshape(b_pad // fold, fold * x_dim)
    yf = y.reshape(b_pad // fold, ld)
    ypf = y_perm.reshape(b_pad // fold, ld)

    # ---- Tile selection: big tiles, but >=2 tiles for moderate B (v7x). ----
    tile_rows = max(row_align,
                    min(_round_up(tile_b, row_align),
                        _round_up(pl.cdiv(b_pad, 2), row_align)))
    tbf = tile_rows // fold                      # folded rows per grid step
    num_tiles = pl.cdiv(b_pad, tile_rows)
    mask_tail = (b_pad % tile_rows) != 0

    kernel = functools.partial(_club_kernel, ld=ld, tbf=tbf,
                               mask_tail=mask_tail,
                               n_valid_frows=b_pad // fold)

    def batch_spec(d):
        return pl.BlockSpec((tbf, d), lambda i: (i, 0))

    def resident_spec(arr):
        return pl.BlockSpec(arr.shape, lambda i: (0, 0))

    cost = pl.CostEstimate(
        flops=2 * B * (x_dim * 2 * h2 + 2 * h2 * y_dim) + 8 * B * y_dim,
        transcendentals=2 * B * y_dim,
        bytes_accessed=4 * (b_pad * (x_dim + 2 * y_dim)
                            + w1_full.size + w2_full.size
                            + num_tiles * 8 * ld),
    )

    partials = pl.pallas_call(
        kernel,
        out_shape=jax.ShapeDtypeStruct((num_tiles, 8, ld), jnp.float32),
        grid=(num_tiles,),
        in_specs=[
            batch_spec(fold * x_dim),   # x (folded)
            batch_spec(ld),             # y (folded)
            batch_spec(ld),             # y[perm] (folded)
            resident_spec(w1_full),     # fused layer-1 weight (resident)
            resident_spec(b1_full),
            resident_spec(w2_full),     # block-diagonal layer-2 weight
            resident_spec(b2_full),
        ],
        out_specs=pl.BlockSpec((1, 8, ld), lambda i: (i, 0, 0)),
        compiler_params=pltpu.CompilerParams(
            dimension_semantics=("parallel",),
            vmem_limit_bytes=32 * 1024 * 1024),
        cost_estimate=cost,
    )(xf, yf, ypf, w1_full, b1_full, w2_full, b2_full)

    # Final reduction over per-tile lane/sublane partials; global batch size.
    return jnp.sum(partials) / (2.0 * B)


def _init_linear(key, fan_in, fan_out):
    """Deterministic init mimicking nn.Linear default (uniform +-1/sqrt(fan_in))."""
    kw, kb = jax.random.split(key)
    bound = 1.0 / jnp.sqrt(fan_in)
    w = jax.random.uniform(kw, (fan_in, fan_out), jnp.float32, -bound, bound)
    b = jax.random.uniform(kb, (1, fan_out), jnp.float32, -bound, bound)
    return w, b


def _reference_forward(x, y, perm, params):
    (w1m, b1m, w2m, b2m, w1l, b1l, w2l, b2l) = params
    h_mu = jnp.maximum(x @ w1m + b1m, 0.0)
    mu = h_mu @ w2m + b2m
    h_lv = jnp.maximum(x @ w1l + b1l, 0.0)
    logvar = jnp.tanh(h_lv @ w2l + b2l)
    positive = -(mu - y) ** 2 / jnp.exp(logvar)
    negative = -(mu - y[perm]) ** 2 / jnp.exp(logvar)
    return (positive.sum(-1) - negative.sum(-1)).mean() / 2.0


if __name__ == "__main__":
    X_DIM, Y_DIM, HIDDEN = 16, 16, 32
    H2 = HIDDEN // 2

    key = jax.random.PRNGKey(0)
    kx, ky, kperm, k1, k2, k3, k4 = jax.random.split(key, 7)

    w1m, b1m = _init_linear(k1, X_DIM, H2)
    w2m, b2m = _init_linear(k2, H2, Y_DIM)
    w1l, b1l = _init_linear(k3, X_DIM, H2)
    w2l, b2l = _init_linear(k4, H2, Y_DIM)
    params = (w1m, b1m, w2m, b2m, w1l, b1l, w2l, b2l)

    # Case 1: tiny batch -> single tile, zero-padded to the row-fold alignment.
    B = 8
    x = jax.random.normal(kx, (B, X_DIM), jnp.float32)
    y = jax.random.normal(ky, (B, Y_DIM), jnp.float32)
    perm = jax.random.permutation(kperm, B)          # torch.randperm equivalent
    out = jax.block_until_ready(club_sample_forward(x, y, perm, params))
    ref = _reference_forward(x, y, perm, params)
    assert jnp.allclose(out, ref, atol=1e-4, rtol=1e-4), (out, ref)

    # Case 2: multi-tile grid with zero-padding and an OOB-masked last tile.
    B2 = 300
    kx2, ky2, kp2 = jax.random.split(jax.random.PRNGKey(1), 3)
    x2 = jax.random.normal(kx2, (B2, X_DIM), jnp.float32)
    y2 = jax.random.normal(ky2, (B2, Y_DIM), jnp.float32)
    perm2 = jax.random.permutation(kp2, B2)
    out2 = jax.block_until_ready(
        club_sample_forward(x2, y2, perm2, params, tile_b=128))
    ref2 = _reference_forward(x2, y2, perm2, params)
    assert jnp.allclose(out2, ref2, atol=1e-4, rtol=1e-4), (out2, ref2)

    print("KERNEL_OK")
</pallas_src>

<mosaic_0001>
module attributes {stable_mosaic.version = 11 : i64} {
  func.func @_club_kernel(%arg0: i32, %arg1: memref<8x128xf32, #tpu.memory_space<vmem>>, %arg2: memref<8x128xf32, #tpu.memory_space<vmem>>, %arg3: memref<8x128xf32, #tpu.memory_space<vmem>>, %arg4: memref<128x256xf32, #tpu.memory_space<vmem>>, %arg5: memref<1x256xf32, #tpu.memory_space<vmem>>, %arg6: memref<256x256xf32, #tpu.memory_space<vmem>>, %arg7: memref<1x256xf32, #tpu.memory_space<vmem>>, %arg8: memref<1x8x128xf32, #tpu.memory_space<vmem>>) attributes {dimension_semantics = [#tpu.dimension_semantics<parallel>], iteration_bounds = array<i64: 1>, scalar_prefetch = 0 : i64, scratch_operands = 0 : i64, tpu.core_type = #tpu.core_type<tc>, window_params = [{transform_indices = @transform_0, window_bounds = array<i64: 8, 128>}, {transform_indices = @transform_1, window_bounds = array<i64: 8, 128>}, {transform_indices = @transform_2, window_bounds = array<i64: 8, 128>}, {pipeline_mode = #tpu.pipeline_mode<synchronous>, transform_indices = @transform_3, window_bounds = array<i64: 128, 256>}, {pipeline_mode = #tpu.pipeline_mode<synchronous>, transform_indices = @transform_4, window_bounds = array<i64: 1, 256>}, {pipeline_mode = #tpu.pipeline_mode<synchronous>, transform_indices = @transform_5, window_bounds = array<i64: 256, 256>}, {pipeline_mode = #tpu.pipeline_mode<synchronous>, transform_indices = @transform_6, window_bounds = array<i64: 1, 256>}, {transform_indices = @transform_7, window_bounds = array<i64: 1, 8, 128>}]} {
    %c0 = arith.constant 0 : index
    %c0_0 = arith.constant 0 : index
    %0 = vector.load %arg1[%c0, %c0_0] : memref<8x128xf32, #tpu.memory_space<vmem>>, vector<8x128xf32>
    %c0_1 = arith.constant 0 : index
    %c0_2 = arith.constant 0 : index
    %1 = vector.load %arg4[%c0_1, %c0_2] : memref<128x256xf32, #tpu.memory_space<vmem>>, vector<128x256xf32>
    %cst = arith.constant dense<0.000000e+00> : vector<8x256xf32>
    %2 = tpu.matmul %0, %1, %cst {dimension_numbers = #tpu.dot_dimension_numbers<[1], [0], [0], [1], [0, 0, 1, 1], [], []>} : vector<8x128xf32>, vector<128x256xf32>, vector<8x256xf32> -> vector<8x256xf32>
    %c0_3 = arith.constant 0 : index
    %c0_4 = arith.constant 0 : index
    %3 = vector.load %arg5[%c0_3, %c0_4] : memref<1x256xf32, #tpu.memory_space<vmem>>, vector<1x256xf32>
    %4 = vector.broadcast %3 : vector<1x256xf32> to vector<8x256xf32>
    %5 = arith.addf %2, %4 : vector<8x256xf32>
    %cst_5 = arith.constant 0.000000e+00 : f32
    %6 = vector.broadcast %cst_5 : f32 to vector<8x256xf32>
    %7 = arith.maximumf %5, %6 : vector<8x256xf32>
    %c0_6 = arith.constant 0 : index
    %c0_7 = arith.constant 0 : index
    %8 = vector.load %arg6[%c0_6, %c0_7] : memref<256x256xf32, #tpu.memory_space<vmem>>, vector<256x256xf32>
    %cst_8 = arith.constant dense<0.000000e+00> : vector<8x256xf32>
    %9 = tpu.matmul %7, %8, %cst_8 {dimension_numbers = #tpu.dot_dimension_numbers<[1], [0], [0], [1], [0, 0, 1, 1], [], []>} : vector<8x256xf32>, vector<256x256xf32>, vector<8x256xf32> -> vector<8x256xf32>
    %c0_9 = arith.constant 0 : index
    %c0_10 = arith.constant 0 : index
    %10 = vector.load %arg7[%c0_9, %c0_10] : memref<1x256xf32, #tpu.memory_space<vmem>>, vector<1x256xf32>
    %11 = vector.broadcast %10 : vector<1x256xf32> to vector<8x256xf32>
    %12 = arith.addf %9, %11 : vector<8x256xf32>
    %13 = vector.extract_strided_slice %12 {offsets = [0, 0], sizes = [8, 128], strides = [1, 1]} : vector<8x256xf32> to vector<8x128xf32>
    %14 = vector.extract_strided_slice %12 {offsets = [0, 128], sizes = [8, 128], strides = [1, 1]} : vector<8x256xf32> to vector<8x128xf32>
    %15 = math.tanh %14 : vector<8x128xf32>
    %cst_11 = arith.constant 0.000000e+00 : f32
    %16 = vector.broadcast %cst_11 : f32 to vector<8x128xf32>
    %17 = arith.subf %16, %15 : vector<8x128xf32>
    %18 = math.exp %17 : vector<8x128xf32>
    %c0_12 = arith.constant 0 : index
    %c0_13 = arith.constant 0 : index
    %19 = vector.load %arg2[%c0_12, %c0_13] : memref<8x128xf32, #tpu.memory_space<vmem>>, vector<8x128xf32>
    %c0_14 = arith.constant 0 : index
    %c0_15 = arith.constant 0 : index
    %20 = vector.load %arg3[%c0_14, %c0_15] : memref<8x128xf32, #tpu.memory_space<vmem>>, vector<8x128xf32>
    %cst_16 = arith.constant 2.000000e+00 : f32
    %21 = vector.broadcast %cst_16 : f32 to vector<8x128xf32>
    %22 = arith.mulf %21, %13 : vector<8x128xf32>
    %23 = arith.subf %22, %19 : vector<8x128xf32>
    %24 = arith.subf %23, %20 : vector<8x128xf32>
    %25 = arith.subf %19, %20 : vector<8x128xf32>
    %26 = arith.mulf %24, %25 : vector<8x128xf32>
    %27 = arith.mulf %26, %18 : vector<8x128xf32>
    %28 = vector.shape_cast %27 : vector<8x128xf32> to vector<1x8x128xf32>
    %cst_17 = arith.constant dense<0.000000e+00> : vector<8x128xf32>
    %29 = vector.multi_reduction <add>, %28, %cst_17 [0] : vector<1x8x128xf32> to vector<8x128xf32>
    %30 = vector.shape_cast %29 : vector<8x128xf32> to vector<1x8x128xf32>
    %c0_18 = arith.constant 0 : index
    %c0_19 = arith.constant 0 : index
    %c0_20 = arith.constant 0 : index
    %31 = vector.load %arg8[%c0_18, %c0_19, %c0_20] : memref<1x8x128xf32, #tpu.memory_space<vmem>>, vector<1x8x128xf32>
    tpu.vector_store %arg8[%c0_18, %c0_19, %c0_20], %30 {strides = array<i32>} : memref<1x8x128xf32, #tpu.memory_space<vmem>>, vector<1x8x128xf32>,
    return
  }
  func.func @transform_0(%arg0: i32) -> (i32, i32) {
    %c0_i32 = arith.constant 0 : i32
    %c0_i32_0 = arith.constant 0 : i32
    return %arg0, %c0_i32 : i32, i32
  }
  func.func @transform_1(%arg0: i32) -> (i32, i32) {
    %c0_i32 = arith.constant 0 : i32
    %c0_i32_0 = arith.constant 0 : i32
    return %arg0, %c0_i32 : i32, i32
  }
  func.func @transform_2(%arg0: i32) -> (i32, i32) {
    %c0_i32 = arith.constant 0 : i32
    %c0_i32_0 = arith.constant 0 : i32
    return %arg0, %c0_i32 : i32, i32
  }
  func.func @transform_3(%arg0: i32) -> (i32, i32) {
    %c0_i32 = arith.constant 0 : i32
    %c0_i32_0 = arith.constant 0 : i32
    %c0_i32_1 = arith.constant 0 : i32
    return %c0_i32, %c0_i32_0 : i32, i32
  }
  func.func @transform_4(%arg0: i32) -> (i32, i32) {
    %c0_i32 = arith.constant 0 : i32
    %c0_i32_0 = arith.constant 0 : i32
    %c0_i32_1 = arith.constant 0 : i32
    return %c0_i32, %c0_i32_0 : i32, i32
  }
  func.func @transform_5(%arg0: i32) -> (i32, i32) {
    %c0_i32 = arith.constant 0 : i32
    %c0_i32_0 = arith.constant 0 : i32
    %c0_i32_1 = arith.constant 0 : i32
    return %c0_i32, %c0_i32_0 : i32, i32
  }
  func.func @transform_6(%arg0: i32) -> (i32, i32) {
    %c0_i32 = arith.constant 0 : i32
    %c0_i32_0 = arith.constant 0 : i32
    %c0_i32_1 = arith.constant 0 : i32
    return %c0_i32, %c0_i32_0 : i32, i32
  }
  func.func @transform_7(%arg0: i32) -> (i32, i32, i32) {
    %c0_i32 = arith.constant 0 : i32
    %c0_i32_0 = arith.constant 0 : i32
    %c0_i32_1 = arith.constant 0 : i32
    return %arg0, %c0_i32, %c0_i32_0 : i32, i32, i32
  }
}

</mosaic_0001>

<llo_original>
// kernel: club_sample_forward.1
$region0: #{club_sample_forward.1}
  #allocation0 [shape = 'u32[]', space=smem, size = 0x4, offset = 0x4, fixed_abs, tag = 'smem constant byte address 0x4 - core index']
  #allocation1 [shape = 'u32[144,128]{1,0:T(1,128)}', space=vmem, size = 0x12000, scoped, tag = 'internal scratch']
  %s0 = inlined_call_operand.vmem [shape: f32[8,128], index: 0, kind: input, shape index: {}]
  %s1 = inlined_call_operand.vmem [shape: f32[8,128], index: 1, kind: input, shape index: {}]
  %s2 = inlined_call_operand.vmem [shape: f32[8,128], index: 2, kind: input, shape index: {}]
  %s3 = inlined_call_operand.vmem [shape: f32[128,256], index: 3, kind: input, shape index: {}]
  %s4 = inlined_call_operand.vmem [shape: f32[1,256], index: 4, kind: input, shape index: {}]
  %s5 = inlined_call_operand.vmem [shape: f32[256,256], index: 5, kind: input, shape index: {}]
  %s6 = inlined_call_operand.vmem [shape: f32[1,256], index: 6, kind: input, shape index: {}]
  %s7 = inlined_call_operand.vmem [shape: f32[1,8,128], index: 7, kind: output, shape index: {}]
  %s8 = sld [smem:[#allocation0]]
  $region38: #{club_sample_forward.1} parent=0
    _
  %s10 = ssub.s32 1, %s8
  %s11 = scalar_select 0, %s10, %s8
  // Predicated region
  $region2: #{club_sample_forward.1} parent=0 // pred_check
    _
  $region3: #{club_sample_forward.1} parent=0 // pred_check_branch
    %13 = sbr.rel (0) target = $region5
  $region4: #{club_sample_forward.1} parent=0 // pred_region
    _
  $region5: #{club_sample_forward.1} parent=0 // pred_fallthru
    _
  // Predicated region
  $region6: #{club_sample_forward.1} parent=0 // pred_check
    _
  $region7: #{club_sample_forward.1} parent=0 // pred_check_branch
    %15 = sbr.rel (0) target = $region9
  $region8: #{club_sample_forward.1} parent=0 // pred_region
    _
  $region9: #{club_sample_forward.1} parent=0 // pred_fallthru
    _
  // Predicated region
  $region10: #{club_sample_forward.1} parent=0 // pred_check
    _
  $region11: #{club_sample_forward.1} parent=0 // pred_check_branch
    %17 = sbr.rel (0) target = $region13
  $region12: #{club_sample_forward.1} parent=0 // pred_region
    _
  $region13: #{club_sample_forward.1} parent=0 // pred_fallthru
    _
  // Predicated region
  $region14: #{club_sample_forward.1} parent=0 // pred_check
    _
  $region15: #{club_sample_forward.1} parent=0 // pred_check_branch
    %19 = sbr.rel (0) target = $region17
  $region16: #{club_sample_forward.1} parent=0 // pred_region
    _
  $region17: #{club_sample_forward.1} parent=0 // pred_fallthru
    _
  // Predicated region
  $region18: #{club_sample_forward.1} parent=0 // pred_check
    _
  $region19: #{club_sample_forward.1} parent=0 // pred_check_branch
    %21 = sbr.rel (0) target = $region21
  $region20: #{club_sample_forward.1} parent=0 // pred_region
    _
  $region21: #{club_sample_forward.1} parent=0 // pred_fallthru
    _
  // Predicated region
  $region22: #{club_sample_forward.1} parent=0 // pred_check
    _
  $region23: #{club_sample_forward.1} parent=0 // pred_check_branch
    %23 = sbr.rel (0) target = $region25
  $region24: #{club_sample_forward.1} parent=0 // pred_region
    _
  $region25: #{club_sample_forward.1} parent=0 // pred_fallthru
    _
  // Predicated region
  $region26: #{club_sample_forward.1} parent=0 // pred_check
    _
  $region27: #{club_sample_forward.1} parent=0 // pred_check_branch
    %25 = sbr.rel (0) target = $region29
  $region28: #{club_sample_forward.1} parent=0 // pred_region
    _
  $region29: #{club_sample_forward.1} parent=0 // pred_fallthru
    _
  %v26 = vld [vmem:[%s0] sm:$0xff]
  %v27 = vld [vmem:[%s3] sm:$0xff]
  %v28 = vld [vmem:[%s3 + $0x8] sm:$0xff]
  %v29 = vld [vmem:[%s3 + $0x10] sm:$0xff]
  %v30 = vld [vmem:[%s3 + $0x18] sm:$0xff]
  %v31 = vld [vmem:[%s3 + $0x20] sm:$0xff]
  %v32 = vld [vmem:[%s3 + $0x28] sm:$0xff]
  %v33 = vld [vmem:[%s3 + $0x30] sm:$0xff]
  %v34 = vld [vmem:[%s3 + $0x38] sm:$0xff]
  %v35 = vld [vmem:[%s3 + $0x40] sm:$0xff]
  %v36 = vld [vmem:[%s3 + $0x48] sm:$0xff]
  %v37 = vld [vmem:[%s3 + $0x50] sm:$0xff]
  %v38 = vld [vmem:[%s3 + $0x58] sm:$0xff]
  %v39 = vld [vmem:[%s3 + $0x60] sm:$0xff]
  %v40 = vld [vmem:[%s3 + $0x68] sm:$0xff]
  %v41 = vld [vmem:[%s3 + $0x70] sm:$0xff]
  %v42 = vld [vmem:[%s3 + $0x78] sm:$0xff]
  %v43 = vld [vmem:[%s3 + $0x80] sm:$0xff]
  %v44 = vld [vmem:[%s3 + $0x88] sm:$0xff]
  %v45 = vld [vmem:[%s3 + $0x90] sm:$0xff]
  %v46 = vld [vmem:[%s3 + $0x98] sm:$0xff]
  %v47 = vld [vmem:[%s3 + $0xa0] sm:$0xff]
  %v48 = vld [vmem:[%s3 + $0xa8] sm:$0xff]
  %v49 = vld [vmem:[%s3 + $0xb0] sm:$0xff]
  %v50 = vld [vmem:[%s3 + $0xb8] sm:$0xff]
  %v51 = vld [vmem:[%s3 + $0xc0] sm:$0xff]
  %v52 = vld [vmem:[%s3 + $0xc8] sm:$0xff]
  %v53 = vld [vmem:[%s3 + $0xd0] sm:$0xff]
  %v54 = vld [vmem:[%s3 + $0xd8] sm:$0xff]
  %v55 = vld [vmem:[%s3 + $0xe0] sm:$0xff]
  %v56 = vld [vmem:[%s3 + $0xe8] sm:$0xff]
  %v57 = vld [vmem:[%s3 + $0xf0] sm:$0xff]
  %v58 = vld [vmem:[%s3 + $0xf8] sm:$0xff]
  %v59 = vld [vmem:[%s4] sm:$0x3]
  %v61 = vlaneseq
  %v62 = vshrl.u32 %v61, 7
  %v63 = vsub.s32 0, %v62
  %v64 = vrot.slane %v59, %v63
  %v65 = vlaneseq
  %v66 = vshrl.u32 %v65, 7
  %v67 = vsub.s32 1, %v66
  %v68 = vrot.slane %v59, %v67
  %71 = vmatprep.subr.mxu0 %v58
  %72 = vmatpush1.msra.mxu0 %v57
  %73 = vmatprep.subr.mxu0 %v56
  %74 = vmatpush1.msra.mxu0 %v55
  %75 = vmatprep.subr.mxu0 %v54
  %76 = vmatpush1.msra.mxu0 %v53
  %77 = vmatprep.subr.mxu0 %v52
  %78 = vmatpush1.msra.mxu0 %v51
  %79 = vmatprep.subr.mxu0 %v50
  %80 = vmatpush1.msra.mxu0 %v49
  %81 = vmatprep.subr.mxu0 %v48
  %82 = vmatpush1.msra.mxu0 %v47
  %83 = vmatprep.subr.mxu0 %v46
  %84 = vmatpush1.msra.mxu0 %v45
  %85 = vmatprep.subr.mxu0 %v44
  %86 = vmatpush1.msra.mxu0 %v43
  %87 = vmatprep.subr.mxu0 %v42
  %88 = vmatpush1.msra.mxu0 %v41
  %89 = vmatprep.subr.mxu0 %v40
  %90 = vmatpush1.msra.mxu0 %v39
  %91 = vmatprep.subr.mxu0 %v38
  %92 = vmatpush1.msra.mxu0 %v37
  %93 = vmatprep.subr.mxu0 %v36
  %94 = vmatpush1.msra.mxu0 %v35
  %95 = vmatprep.subr.mxu0 %v34
  %96 = vmatpush1.msra.mxu0 %v33
  %97 = vmatprep.subr.mxu0 %v32
  %98 = vmatpush1.msra.mxu0 %v31
  %99 = vmatprep.subr.mxu0 %v30
  %100 = vmatpush1.msra.mxu0 %v29
  %101 = vmatprep.subr.mxu0 %v28
  %102 = vmatpush1.msra.mxu0 %v27
  %103 = vmatprep.subr.mxu0 0.0
  %104 = vmatpush2.msra.mxu0 0.0
  %105 = vmatprep.subr.mxu0 0.0
  %106 = vmatpush2.msra.mxu0 0.0
  %107 = vmatprep.subr.mxu0 0.0
  %108 = vmatpush2.msra.mxu0 0.0
  %109 = vmatprep.subr.mxu0 0.0
  %110 = vmatpush2.msra.mxu0 0.0
  %111 = vmatprep.subr.mxu0 0.0
  %112 = vmatpush2.msra.mxu0 0.0
  %113 = vmatprep.subr.mxu0 0.0
  %114 = vmatpush2.msra.mxu0 0.0
  %115 = vmatprep.subr.mxu0 0.0
  %116 = vmatpush2.msra.mxu0 0.0
  %117 = vmatprep.subr.mxu0 0.0
  %118 = vmatpush2.msra.mxu0 0.0
  %119 = vmatprep.subr.mxu0 0.0
  %120 = vmatpush2.msra.mxu0 0.0
  %121 = vmatprep.subr.mxu0 0.0
  %122 = vmatpush2.msra.mxu0 0.0
  %123 = vmatprep.subr.mxu0 0.0
  %124 = vmatpush2.msra.mxu0 0.0
  %125 = vmatprep.subr.mxu0 0.0
  %126 = vmatpush2.msra.mxu0 0.0
  %127 = vmatprep.subr.mxu0 0.0
  %128 = vmatpush2.msra.mxu0 0.0
  %129 = vmatprep.subr.mxu0 0.0
  %130 = vmatpush2.msra.mxu0 0.0
  %131 = vmatprep.subr.mxu0 0.0
  %132 = vmatpush2.msra.mxu0 0.0
  %133 = vmatprep.subr.mxu0 0.0
  %134 = vmatpush2.msra.mxu0 0.0
  %135 = vmatprep.mubr.f32.mxu0 0.0
  %136 = vmatmul.mubr.f32.gmra.mxu0 %v26
  %v137 = vpop.f32.mrf.mxu0
  %v138 = vadd.f32 %v64, %v137
  %v139 = vpop.f32.mrf.mxu0
  %v140 = vadd.f32 %v68, %v139
  %141 = vdwg.mxu0
  %v142 = vmax.f32 %v138, 0.0
  %v143 = vmax.f32 %v140, 0.0
  %v144 = vld [vmem:[%s5] sm:$0xff]
  %v145 = vld [vmem:[%s5 + $0x8] sm:$0xff]
  %v146 = vld [vmem:[%s5 + $0x10] sm:$0xff]
  %v147 = vld [vmem:[%s5 + $0x18] sm:$0xff]
  %v148 = vld [vmem:[%s5 + $0x20] sm:$0xff]
  %v149 = vld [vmem:[%s5 + $0x28] sm:$0xff]
  %v150 = vld [vmem:[%s5 + $0x30] sm:$0xff]
  %v151 = vld [vmem:[%s5 + $0x38] sm:$0xff]
  %v152 = vld [vmem:[%s5 + $0x40] sm:$0xff]
  %v153 = vld [vmem:[%s5 + $0x48] sm:$0xff]
  %v154 = vld [vmem:[%s5 + $0x50] sm:$0xff]
  %v155 = vld [vmem:[%s5 + $0x58] sm:$0xff]
  %v156 = vld [vmem:[%s5 + $0x60] sm:$0xff]
  %v157 = vld [vmem:[%s5 + $0x68] sm:$0xff]
  %v158 = vld [vmem:[%s5 + $0x70] sm:$0xff]
  %v159 = vld [vmem:[%s5 + $0x78] sm:$0xff]
  %v160 = vld [vmem:[%s5 + $0x80] sm:$0xff]
  %v161 = vld [vmem:[%s5 + $0x88] sm:$0xff]
  %v162 = vld [vmem:[%s5 + $0x90] sm:$0xff]
  %v163 = vld [vmem:[%s5 + $0x98] sm:$0xff]
  %v164 = vld [vmem:[%s5 + $0xa0] sm:$0xff]
  %v165 = vld [vmem:[%s5 + $0xa8] sm:$0xff]
  %v166 = vld [vmem:[%s5 + $0xb0] sm:$0xff]
  %v167 = vld [vmem:[%s5 + $0xb8] sm:$0xff]
  %v168 = vld [vmem:[%s5 + $0xc0] sm:$0xff]
  %v169 = vld [vmem:[%s5 + $0xc8] sm:$0xff]
  %v170 = vld [vmem:[%s5 + $0xd0] sm:$0xff]
  %v171 = vld [vmem:[%s5 + $0xd8] sm:$0xff]
  %v172 = vld [vmem:[%s5 + $0xe0] sm:$0xff]
  %v173 = vld [vmem:[%s5 + $0xe8] sm:$0xff]
  %v174 = vld [vmem:[%s5 + $0xf0] sm:$0xff]
  %v175 = vld [vmem:[%s5 + $0xf8] sm:$0xff]
  %v176 = vld [vmem:[%s5 + $0x100] sm:$0xff]
  %v177 = vld [vmem:[%s5 + $0x108] sm:$0xff]
  %v178 = vld [vmem:[%s5 + $0x110] sm:$0xff]
  %v179 = vld [vmem:[%s5 + $0x118] sm:$0xff]
  %v180 = vld [vmem:[%s5 + $0x120] sm:$0xff]
  %v181 = vld [vmem:[%s5 + $0x128] sm:$0xff]
  %v182 = vld [vmem:[%s5 + $0x130] sm:$0xff]
  %v183 = vld [vmem:[%s5 + $0x138] sm:$0xff]
  %v184 = vld [vmem:[%s5 + $0x140] sm:$0xff]
  %v185 = vld [vmem:[%s5 + $0x148] sm:$0xff]
  %v186 = vld [vmem:[%s5 + $0x150] sm:$0xff]
  %v187 = vld [vmem:[%s5 + $0x158] sm:$0xff]
  %v188 = vld [vmem:[%s5 + $0x160] sm:$0xff]
  %v189 = vld [vmem:[%s5 + $0x168] sm:$0xff]
  %v190 = vld [vmem:[%s5 + $0x170] sm:$0xff]
  %v191 = vld [vmem:[%s5 + $0x178] sm:$0xff]
  %v192 = vld [vmem:[%s5 + $0x180] sm:$0xff]
  %v193 = vld [vmem:[%s5 + $0x188] sm:$0xff]
  %v194 = vld [vmem:[%s5 + $0x190] sm:$0xff]
  %v195 = vld [vmem:[%s5 + $0x198] sm:$0xff]
  %v196 = vld [vmem:[%s5 + $0x1a0] sm:$0xff]
  %v197 = vld [vmem:[%s5 + $0x1a8] sm:$0xff]
  %v198 = vld [vmem:[%s5 + $0x1b0] sm:$0xff]
  %v199 = vld [vmem:[%s5 + $0x1b8] sm:$0xff]
  %v200 = vld [vmem:[%s5 + $0x1c0] sm:$0xff]
  %v201 = vld [vmem:[%s5 + $0x1c8] sm:$0xff]
  %v202 = vld [vmem:[%s5 + $0x1d0] sm:$0xff]
  %v203 = vld [vmem:[%s5 + $0x1d8] sm:$0xff]
  %v204 = vld [vmem:[%s5 + $0x1e0] sm:$0xff]
  %v205 = vld [vmem:[%s5 + $0x1e8] sm:$0xff]
  %v206 = vld [vmem:[%s5 + $0x1f0] sm:$0xff]
  %v207 = vld [vmem:[%s5 + $0x1f8] sm:$0xff]
  %v208 = vld [vmem:[%s6] sm:$0x3]
  %v210 = vlaneseq
  %v211 = vshrl.u32 %v210, 7
  %v212 = vsub.s32 0, %v211
  %v213 = vrot.slane %v208, %v212
  %v214 = vlaneseq
  %v215 = vshrl.u32 %v214, 7
  %v216 = vsub.s32 1, %v215
  %v217 = vrot.slane %v208, %v216
  %220 = vmatprep.subr.mxu0 %v175
  %221 = vmatpush1.msra.mxu0 %v174
  %222 = vmatprep.subr.mxu0 %v173
  %223 = vmatpush1.msra.mxu0 %v172
  %224 = vmatprep.subr.mxu0 %v171
  %225 = vmatpush1.msra.mxu0 %v170
  %226 = vmatprep.subr.mxu0 %v169
  %227 = vmatpush1.msra.mxu0 %v168
  %228 = vmatprep.subr.mxu0 %v167
  %229 = vmatpush1.msra.mxu0 %v166
  %230 = vmatprep.subr.mxu0 %v165
  %231 = vmatpush1.msra.mxu0 %v164
  %232 = vmatprep.subr.mxu0 %v163
  %233 = vmatpush1.msra.mxu0 %v162
  %234 = vmatprep.subr.mxu0 %v161
  %235 = vmatpush1.msra.mxu0 %v160
  %236 = vmatprep.subr.mxu0 %v159
  %237 = vmatpush1.msra.mxu0 %v158
  %238 = vmatprep.subr.mxu0 %v157
  %239 = vmatpush1.msra.mxu0 %v156
  %240 = vmatprep.subr.mxu0 %v155
  %241 = vmatpush1.msra.mxu0 %v154
  %242 = vmatprep.subr.mxu0 %v153
  %243 = vmatpush1.msra.mxu0 %v152
  %244 = vmatprep.subr.mxu0 %v151
  %245 = vmatpush1.msra.mxu0 %v150
  %246 = vmatprep.subr.mxu0 %v149
  %247 = vmatpush1.msra.mxu0 %v148
  %248 = vmatprep.subr.mxu0 %v147
  %249 = vmatpush1.msra.mxu0 %v146
  %250 = vmatprep.subr.mxu0 %v145
  %251 = vmatpush1.msra.mxu0 %v144
  %252 = vmatprep.subr.mxu0 %v207
  %253 = vmatpush2.msra.mxu0 %v206
  %254 = vmatprep.subr.mxu0 %v205
  %255 = vmatpush2.msra.mxu0 %v204
  %256 = vmatprep.subr.mxu0 %v203
  %257 = vmatpush2.msra.mxu0 %v202
  %258 = vmatprep.subr.mxu0 %v201
  %259 = vmatpush2.msra.mxu0 %v200
  %260 = vmatprep.subr.mxu0 %v199
  %261 = vmatpush2.msra.mxu0 %v198
  %262 = vmatprep.subr.mxu0 %v197
  %263 = vmatpush2.msra.mxu0 %v196
  %264 = vmatprep.subr.mxu0 %v195
  %265 = vmatpush2.msra.mxu0 %v194
  %266 = vmatprep.subr.mxu0 %v193
  %267 = vmatpush2.msra.mxu0 %v192
  %268 = vmatprep.subr.mxu0 %v191
  %269 = vmatpush2.msra.mxu0 %v190
  %270 = vmatprep.subr.mxu0 %v189
  %271 = vmatpush2.msra.mxu0 %v188
  %272 = vmatprep.subr.mxu0 %v187
  %273 = vmatpush2.msra.mxu0 %v186
  %274 = vmatprep.subr.mxu0 %v185
  %275 = vmatpush2.msra.mxu0 %v184
  %276 = vmatprep.subr.mxu0 %v183
  %277 = vmatpush2.msra.mxu0 %v182
  %278 = vmatprep.subr.mxu0 %v181
  %279 = vmatpush2.msra.mxu0 %v180
  %280 = vmatprep.subr.mxu0 %v179
  %281 = vmatpush2.msra.mxu0 %v178
  %282 = vmatprep.subr.mxu0 %v177
  %283 = vmatpush2.msra.mxu0 %v176
  %284 = vmatprep.mubr.f32.mxu0 %v143
  %285 = vmatmul.mubr.f32.gmra.mxu0 %v142
  %v286 = vpop.f32.mrf.mxu0
  %v287 = vadd.f32 %v213, %v286
  %v288 = vpop.f32.mrf.mxu0
  %v289 = vadd.f32 %v217, %v288
  %290 = vdwg.mxu0
  %v291 = vtanh.pop %v289
  %v292 = vsub.f32 0.0, %v291
  %v293 = vmul.f32 %v292, 1.442695
  %v294 = vpow.pop %v293
  %v295 = vld [vmem:[%s1] sm:$0xff]
  %v296 = vld [vmem:[%s2] sm:$0xff]
  %v297 = vmul.f32 %v287, 2.0
  %v298 = vsub.f32 %v297, %v295
  %v299 = vsub.f32 %v298, %v296
  %v300 = vsub.f32 %v295, %v296
  %v301 = vmul.f32 %v299, %v300
  %v302 = vmul.f32 %v301, %v294
  %v303 = vadd.f32 %v302, 0.0
  %304 = vst [vmem:[%s7] sm:$0xff] %v303
  // Predicated region
  $region30: #{club_sample_forward.1} parent=0 // pred_check
    _
  $region31: #{club_sample_forward.1} parent=0 // pred_check_branch
    %306 = sbr.rel (0) target = $region33
  $region32: #{club_sample_forward.1} parent=0 // pred_region
    _
  $region33: #{club_sample_forward.1} parent=0 // pred_fallthru
    _
  // Predicated region
  $region34: #{club_sample_forward.1} parent=0 // pred_check
    _
  $region35: #{club_sample_forward.1} parent=0 // pred_check_branch
    %308 = sbr.rel (0) target = $region37
  $region36: #{club_sample_forward.1} parent=0 // pred_region
    _
  $region37: #{club_sample_forward.1} parent=0 // pred_fallthru
    _

</llo_original>
